<compile_context>
chip_gen: v5e
topology: v5e:2x2
jax: 0.10.0
libtpu: 0.0.40
codegen_flags: <defaults>
</compile_context>

<pallas_src>
import jax
import jax.numpy as jnp
from jax.experimental import pallas as pl
from jax.experimental.pallas import tpu as pltpu


_LANE_WIDTHS = (512, 256, 128)          # widest lane-dense width dividing the size wins
_TARGET_TILE_BYTES = 4 * 1024 * 1024    # ~4 MiB per buffer (sweet spot per measured data)
_VMEM_LIMIT_BYTES = 32 * 1024 * 1024    # explicit scoped-VMEM limit, safe on v5e/v6e/v7x


def _cubic_kernel(coef_ref, x_ref, o_ref):
    # coef_ref: SMEM (4,) f32 -> [a, b, c, d]
    a = coef_ref[0]
    b = coef_ref[1]
    c = coef_ref[2]
    d = coef_ref[3]
    x = x_ref[...].astype(jnp.float32)
    # Horner form: ((a*x + b)*x + c)*x + d  == a*x^3 + b*x^2 + c*x + d
    y = ((a * x + b) * x + c) * x + d
    o_ref[...] = y.astype(o_ref.dtype)


def _run_2d(x2d, coef, out_dtype):
    """Run the cubic kernel over a lane-dense (rows, C) slab, row-tiled."""
    rows, C = x2d.shape
    in_itemsize = jnp.dtype(x2d.dtype).itemsize
    out_itemsize = jnp.dtype(out_dtype).itemsize

    # Sublane packing: sub-32-bit dtypes pack 16/32 rows per vreg group, so the
    # tile's row count must be a multiple of 8 * (4 / min_itemsize).
    min_itemsize = min(in_itemsize, out_itemsize)
    sublane_mult = 8 * max(1, 4 // min_itemsize)

    # Biggest row tile keeping each buffer ~= _TARGET_TILE_BYTES (use the wider
    # of in/out dtype so the VMEM estimate is conservative).
    max_itemsize = max(in_itemsize, out_itemsize)
    target_rows = _TARGET_TILE_BYTES // (C * max_itemsize)
    target_rows = max(sublane_mult, (target_rows // sublane_mult) * sublane_mult)

    if rows <= target_rows:
        tile_rows = rows          # single block == full array dims (always legal)
    else:
        tile_rows = target_rows   # sublane-aligned; boundary block masked by Pallas

    grid = (pl.cdiv(rows, tile_rows),)
    n_elems = rows * C

    return pl.pallas_call(
        _cubic_kernel,
        out_shape=jax.ShapeDtypeStruct((rows, C), out_dtype),
        grid_spec=pltpu.PrefetchScalarGridSpec(
            num_scalar_prefetch=0,
            grid=grid,
            in_specs=[
                pl.BlockSpec(memory_space=pltpu.SMEM),            # [a, b, c, d]
                pl.BlockSpec((tile_rows, C), lambda i: (i, 0)),   # x tile
            ],
            out_specs=pl.BlockSpec((tile_rows, C), lambda i: (i, 0)),
        ),
        compiler_params=pltpu.CompilerParams(
            # 'parallel' lets v7x shard the row axis across its 2 TensorCores;
            # measured neutral on single-TC v5e/v6e.
            dimension_semantics=("parallel",),
            vmem_limit_bytes=_VMEM_LIMIT_BYTES,
        ),
        cost_estimate=pl.CostEstimate(
            flops=6 * n_elems,
            transcendentals=0,
            bytes_accessed=n_elems * (in_itemsize + out_itemsize),
        ),
    )(coef, x2d)


def cubic_forward(x, a, b, c, d):
    """Elementwise cubic polynomial  a*x^3 + b*x^2 + c*x + d  via a Pallas TPU kernel.

    Accepts any shape / floating dtype.  Sizes divisible by 128 take the
    zero-copy lane-dense path; only truly ragged sizes use a (cheap, small)
    pad+slice fallback.
    """
    orig_shape = x.shape
    total = int(x.size)
    # Match PyTorch type promotion against the f32 scalar parameters.
    out_dtype = jnp.result_type(x.dtype, jnp.float32)

    coef = jnp.asarray([a, b, c, d], dtype=jnp.float32)

    if total == 0:
        return jnp.zeros(orig_shape, out_dtype)

    # Fast path: widest lane width in {512, 256, 128} that divides the size.
    lane = next((c for c in _LANE_WIDTHS if total % c == 0), None)
    if lane is not None:
        rows = total // lane
        out2d = _run_2d(x.reshape(rows, lane), coef, out_dtype)
        return out2d.reshape(orig_shape)

    # Ragged fallback (size not a multiple of 128): pad the flat array up to a
    # (rows, 128) slab, run the kernel, slice the valid prefix back out.  The
    # padded tail values are garbage-in/garbage-out and never escape the slice.
    lane = 128
    rows = pl.cdiv(total, lane)
    pad = rows * lane - total
    x_flat = jnp.pad(x.reshape(-1), (0, pad))
    out2d = _run_2d(x_flat.reshape(rows, lane), coef, out_dtype)
    return out2d.reshape(-1)[:total].reshape(orig_shape)


if __name__ == "__main__":
    key = jax.random.PRNGKey(0)
    k_x, k_a, k_b, k_c, k_d, k_y, k_z = jax.random.split(key, 7)

    # Deterministic "parameter" init (stand-in for torch.randn(()))
    a = jax.random.normal(k_a, ()).astype(jnp.float32)
    b = jax.random.normal(k_b, ()).astype(jnp.float32)
    c = jax.random.normal(k_c, ()).astype(jnp.float32)
    d = jax.random.normal(k_d, ()).astype(jnp.float32)

    # Small 4-D input: 2*4*16*16 = 2048 elements -> lane width 512, no pad/slice.
    x = jax.random.normal(k_x, (2, 4, 16, 16), dtype=jnp.float32)
    out = jax.block_until_ready(cubic_forward(x, a, b, c, d))
    ref = a * x**3 + b * x**2 + c * x + d
    assert out.shape == x.shape and out.dtype == x.dtype
    assert jnp.allclose(out, ref, atol=1e-5, rtol=1e-5)

    # Exercises the 256-lane fast path (1280 elements: %512 != 0, %256 == 0).
    z = jax.random.normal(k_z, (2, 5, 128), dtype=jnp.float32)
    out_z = jax.block_until_ready(cubic_forward(z, a, b, c, d))
    ref_z = a * z**3 + b * z**2 + c * z + d
    assert out_z.shape == z.shape
    assert jnp.allclose(out_z, ref_z, atol=1e-5, rtol=1e-5)

    # Exercises the ragged fallback (105 elements, not a multiple of 128).
    y = jax.random.normal(k_y, (3, 5, 7), dtype=jnp.float32)
    out_y = jax.block_until_ready(cubic_forward(y, a, b, c, d))
    ref_y = a * y**3 + b * y**2 + c * y + d
    assert out_y.shape == y.shape
    assert jnp.allclose(out_y, ref_y, atol=1e-5, rtol=1e-5)

    print("KERNEL_OK")
</pallas_src>

<mosaic_0001>
module attributes {stable_mosaic.version = 11 : i64} {
  func.func @_cubic_kernel(%arg0: i32, %arg1: memref<4xf32, #tpu.memory_space<smem>>, %arg2: memref<4x512xf32, #tpu.memory_space<vmem>>, %arg3: memref<4x512xf32, #tpu.memory_space<vmem>>) attributes {dimension_semantics = [#tpu.dimension_semantics<parallel>], iteration_bounds = array<i64: 1>, scalar_prefetch = 0 : i64, scratch_operands = 0 : i64, tpu.core_type = #tpu.core_type<tc>, window_params = [{transform_indices = @transform_0, window_bounds = array<i64: 4>}, {transform_indices = @transform_1, window_bounds = array<i64: 4, 512>}, {transform_indices = @transform_2, window_bounds = array<i64: 4, 512>}]} {
    %c0 = arith.constant 0 : index
    %0 = memref.load %arg1[%c0] : memref<4xf32, #tpu.memory_space<smem>>
    %c1 = arith.constant 1 : index
    %1 = memref.load %arg1[%c1] : memref<4xf32, #tpu.memory_space<smem>>
    %c2 = arith.constant 2 : index
    %2 = memref.load %arg1[%c2] : memref<4xf32, #tpu.memory_space<smem>>
    %c3 = arith.constant 3 : index
    %3 = memref.load %arg1[%c3] : memref<4xf32, #tpu.memory_space<smem>>
    %c0_0 = arith.constant 0 : index
    %c0_1 = arith.constant 0 : index
    %4 = vector.load %arg2[%c0_0, %c0_1] : memref<4x512xf32, #tpu.memory_space<vmem>>, vector<4x512xf32>
    %5 = vector.broadcast %0 : f32 to vector<4x512xf32>
    %6 = arith.mulf %5, %4 : vector<4x512xf32>
    %7 = vector.broadcast %1 : f32 to vector<4x512xf32>
    %8 = arith.addf %6, %7 : vector<4x512xf32>
    %9 = arith.mulf %8, %4 : vector<4x512xf32>
    %10 = vector.broadcast %2 : f32 to vector<4x512xf32>
    %11 = arith.addf %9, %10 : vector<4x512xf32>
    %12 = arith.mulf %11, %4 : vector<4x512xf32>
    %13 = vector.broadcast %3 : f32 to vector<4x512xf32>
    %14 = arith.addf %12, %13 : vector<4x512xf32>
    %c0_2 = arith.constant 0 : index
    %c0_3 = arith.constant 0 : index
    %15 = vector.load %arg3[%c0_2, %c0_3] : memref<4x512xf32, #tpu.memory_space<vmem>>, vector<4x512xf32>
    tpu.vector_store %arg3[%c0_2, %c0_3], %14 {strides = array<i32>} : memref<4x512xf32, #tpu.memory_space<vmem>>, vector<4x512xf32>,
    return
  }
  func.func @transform_0(%arg0: i32) -> i32 {
    %c0_i32 = arith.constant 0 : i32
    %c0_i32_0 = arith.constant 0 : i32
    return %c0_i32 : i32
  }
  func.func @transform_1(%arg0: i32) -> (i32, i32) {
    %c0_i32 = arith.constant 0 : i32
    %c0_i32_0 = arith.constant 0 : i32
    return %arg0, %c0_i32 : i32, i32
  }
  func.func @transform_2(%arg0: i32) -> (i32, i32) {
    %c0_i32 = arith.constant 0 : i32
    %c0_i32_0 = arith.constant 0 : i32
    return %arg0, %c0_i32 : i32, i32
  }
}

</mosaic_0001>

<llo_original>
// kernel: tpu_custom_call.1
$region0: #{tpu_custom_call.1}
  #allocation0 [shape = 'u32[]', space=smem, size = 0x4, offset = 0x4, fixed_abs, tag = 'smem constant byte address 0x4 - core index']
  #allocation1 [shape = 'u32[72,128]{1,0:T(1,128)}', space=vmem, size = 0x9000, scoped, tag = 'internal scratch']
  %s0 = inlined_call_operand.hbm [shape: f32[4], index: 0, kind: input, shape index: {}]
  %s1 = inlined_call_operand.hbm [shape: f32[4,512], index: 1, kind: input, shape index: {}]
  %s2 = inlined_call_operand.hbm [shape: f32[4,512], index: 2, kind: output, shape index: {}]
  %s3 = sld [smem:[#allocation0]]
  $region26: #{tpu_custom_call.1} parent=0
    _
  %s5 = ssub.s32 1, %s3
  %s6 = scalar_select 0, %s5, %s3
  $region1: #{tpu_custom_call.1} parent=0
    #allocation2 [shape = 'u8[512]{0}', space=smem, size = 0x200, scoped, tag = 'input window, operand 0, single buffered']
    #allocation3 [shape = 's32[1]{0}', space=sflag, size = 0x4, scoped, tag = 'scoped memory for tpu_custom_call.1']
    #allocation4 [shape = 's32[1]{0}', space=sflag, size = 0x4, scoped, tag = 'scoped memory for tpu_custom_call.1']
    #allocation5 [shape = 's32[1]{0}', space=sflag, size = 0x4, scoped, tag = 'scoped memory for tpu_custom_call.1']
    #allocation6 [shape = 'u8[8192]{0}', space=vmem, size = 0x2000, scoped, tag = 'input window, operand 1, single buffered']
    #allocation7 [shape = 'u8[8192]{0}', space=vmem, size = 0x2000, scoped, tag = 'output window, operand 0, single buffered']
    %7 = vsyncpa [#allocation5], 0
    %8 = vsyncpa [#allocation3], 0
    %9 = vsyncpa [#allocation4], 0
    // Predicated region
    $region2: #{tpu_custom_call.1} parent=1 // pred_check
      _
    $region3: #{tpu_custom_call.1} parent=1 // pred_check_branch
      %11 = sbr.rel (0) target = $region5
    $region4: #{tpu_custom_call.1} parent=1 // pred_region
      %13 = vsyncadd [#allocation5], 0
      %s15 = sshll.u32 %s0, 4
      %s16 = int_to_ptr.hbm [resolvable:$true] %s15
      %18 = dma.hbm_to_smem %s16, 16, [#allocation2], [#allocation5]
    $region5: #{tpu_custom_call.1} parent=1 // pred_fallthru
      _
    // Predicated region
    $region6: #{tpu_custom_call.1} parent=1 // pred_check
      _
    $region7: #{tpu_custom_call.1} parent=1 // pred_check_branch
      %20 = sbr.rel (0) target = $region9
    $region8: #{tpu_custom_call.1} parent=1 // pred_region
      %22 = vsyncadd [#allocation3], 0
      %s24 = sshll.u32 %s1, 4
      %s25 = int_to_ptr.hbm [resolvable:$true] %s24
      %s26 = sshll.u32 [#allocation6], 4
      %s27 = int_to_ptr.vmem [resolvable:$true] %s26
      %29 = dma.hbm_to_vmem [thread:$0]  %s25, 256, %s27, [#allocation3]
    $region9: #{tpu_custom_call.1} parent=1 // pred_fallthru
      _
    // Predicated region
    $region10: #{tpu_custom_call.1} parent=1 // pred_check
      _
    $region11: #{tpu_custom_call.1} parent=1 // pred_check_branch
      %31 = sbr.rel (0) target = $region13
    $region12: #{tpu_custom_call.1} parent=1 // pred_region
      %33 = dma.done [#allocation5], 16
    $region13: #{tpu_custom_call.1} parent=1 // pred_fallthru
      _
    // Predicated region
    $region14: #{tpu_custom_call.1} parent=1 // pred_check
      _
    $region15: #{tpu_custom_call.1} parent=1 // pred_check_branch
      %35 = sbr.rel (0) target = $region17
    $region16: #{tpu_custom_call.1} parent=1 // pred_region
      %37 = dma.done [#allocation3], 256
    $region17: #{tpu_custom_call.1} parent=1 // pred_fallthru
      _
    %38 = sfence
    %s39 = sld [smem:[#allocation2]]
    %s40 = sld [smem:[#allocation2 + $0x1]]
    %s41 = sld [smem:[#allocation2 + $0x2]]
    %s42 = sld [smem:[#allocation2 + $0x3]]
    %v43 = vld [vmem:[#allocation6] sm:$0xff]
    %v44 = vld [vmem:[#allocation6 + $0x8] sm:$0xff]
    %v45 = vstv %s39
    %v46 = vmul.f32 %v45, %v43
    %v47 = vmul.f32 %v45, %v44
    %v48 = vstv %s40
    %v49 = vadd.f32 %v46, %v48
    %v50 = vadd.f32 %v47, %v48
    %v51 = vmul.f32 %v49, %v43
    %v52 = vmul.f32 %v50, %v44
    %v53 = vstv %s41
    %v54 = vadd.f32 %v51, %v53
    %v55 = vadd.f32 %v52, %v53
    %v56 = vmul.f32 %v54, %v43
    %v57 = vmul.f32 %v55, %v44
    %v58 = vstv %s42
    %v59 = vadd.f32 %v56, %v58
    %v60 = vadd.f32 %v57, %v58
    %61 = vst [vmem:[#allocation7] sm:$0xff] %v59
    %62 = vst [vmem:[#allocation7 + $0x8] sm:$0xff] %v60
    // Predicated region
    $region18: #{tpu_custom_call.1} parent=1 // pred_check
      _
    $region19: #{tpu_custom_call.1} parent=1 // pred_check_branch
      %64 = sbr.rel (0) target = $region21
    $region20: #{tpu_custom_call.1} parent=1 // pred_region
      %66 = vsyncadd [#allocation4], 0
      %s68 = sshll.u32 [#allocation7], 4
      %s69 = int_to_ptr.vmem [resolvable:$true] %s68
      %s70 = sshll.u32 %s2, 4
      %s71 = int_to_ptr.hbm [resolvable:$true] %s70
      %73 = dma.vmem_to_hbm [thread:$0]  %s69, 256, %s71, [#allocation4]
    $region21: #{tpu_custom_call.1} parent=1 // pred_fallthru
      _
    // Predicated region
    $region22: #{tpu_custom_call.1} parent=1 // pred_check
      _
    $region23: #{tpu_custom_call.1} parent=1 // pred_check_branch
      %75 = sbr.rel (0) target = $region25
    $region24: #{tpu_custom_call.1} parent=1 // pred_region
      %77 = dma.done [#allocation4], 256
    $region25: #{tpu_custom_call.1} parent=1 // pred_fallthru
      _
    %78 = vsyncpa [#allocation3], 1
    %79 = vsyncpa [#allocation4], 1
    %80 = vsyncpa [#allocation5], 1

</llo_original>
